<compile_context>
chip_gen: v5e
topology: v5e:2x2
jax: 0.10.0
libtpu: 0.0.40
codegen_flags: <defaults>
</compile_context>

<pallas_src>
import jax
import jax.numpy as jnp
from jax.experimental import pallas as pl
from jax.experimental.pallas import tpu as pltpu


def _vd_mul_kernel(x_ref, m_ref, o_ref):
    # Mask block broadcasts over the time (row) axis of the x block.
    o_ref[...] = x_ref[...] * m_ref[...]


def _pick_row_block(n_rows, row_elems, itemsize, target_bytes=1 << 20):
    """Rows per block: aim for ~1 MiB blocks, multiple of 8 sublanes.

    Sized so that double-buffered input + output (~4x block) stays far below
    v7x's 64 MiB VMEM (32 MiB scoped default)."""
    rows = max(1, target_bytes // max(1, row_elems * itemsize))
    if rows >= n_rows:
        return n_rows                      # full dim -> always a legal block
    rows = max(8, (rows // 8) * 8)         # keep the sublane axis a multiple of 8
    return min(rows, n_rows)


def variational_dropout(x, seed, *, p=0.5, batch_first=False, training=True):
    """JAX/Pallas equivalent of VariationalDropout.forward."""
    if not training or p == 0.0:
        return x

    key = jax.random.PRNGKey(seed)
    itemsize = jnp.dtype(x.dtype).itemsize
    scale = jnp.asarray(1.0 / (1.0 - p), dtype=x.dtype)
    cparams = pltpu.CompilerParams(vmem_limit_bytes=32 * 1024 * 1024)

    if batch_first:
        # Native (B, T, H) kernel: mask (B, 1, H) shared across T, no transposes.
        B, T, H = x.shape
        keep = jax.random.bernoulli(key, 1.0 - p, (B, 1, H))
        mask = keep.astype(x.dtype) * scale

        t_blk = _pick_row_block(T, H, itemsize)
        grid = (B, pl.cdiv(T, t_blk))
        return pl.pallas_call(
            _vd_mul_kernel,
            out_shape=jax.ShapeDtypeStruct((B, T, H), x.dtype),
            grid=grid,
            in_specs=[
                pl.BlockSpec((1, t_blk, H), lambda b, t: (b, t, 0)),
                pl.BlockSpec((1, 1, H), lambda b, t: (b, 0, 0)),
            ],
            out_specs=pl.BlockSpec((1, t_blk, H), lambda b, t: (b, t, 0)),
            compiler_params=pltpu.CompilerParams(
                dimension_semantics=("parallel", "parallel"),
                vmem_limit_bytes=32 * 1024 * 1024,
            ),
        )(x, mask)

    # batch_first=False: (T, B, H).  Flatten (B, H) -> C for a lane-dense last
    # dim; the (1, B, H) mask flattens to (1, C) and broadcasts over T rows.
    T, B, H = x.shape
    C = B * H
    keep = jax.random.bernoulli(key, 1.0 - p, (1, C))
    mask = keep.astype(x.dtype) * scale
    x2 = x.reshape(T, C)                   # contiguous reshape: no data movement

    t_blk = _pick_row_block(T, C, itemsize)
    grid = (pl.cdiv(T, t_blk),)
    out2 = pl.pallas_call(
        _vd_mul_kernel,
        out_shape=jax.ShapeDtypeStruct((T, C), x.dtype),
        grid=grid,
        in_specs=[
            pl.BlockSpec((t_blk, C), lambda t: (t, 0)),
            pl.BlockSpec((1, C), lambda t: (0, 0)),
        ],
        out_specs=pl.BlockSpec((t_blk, C), lambda t: (t, 0)),
        compiler_params=pltpu.CompilerParams(
            dimension_semantics=("parallel",),
            vmem_limit_bytes=32 * 1024 * 1024,
        ),
    )(x2, mask)
    return out2.reshape(T, B, H)


if __name__ == "__main__":
    key = jax.random.PRNGKey(0)
    T, B, H = 8, 4, 32          # (seq, batch, hidden) for batch_first=False
    p = 0.5
    scale = 1.0 / (1.0 - p)

    x = jax.random.normal(key, (T, B, H), dtype=jnp.float32)

    # --- batch_first=False path ---
    out = variational_dropout(x, seed=1234, p=p, batch_first=False, training=True)
    out = jax.block_until_ready(out)

    ratio = out / jnp.where(x == 0, 1.0, x)
    ok_values = bool(jnp.all(jnp.logical_or(jnp.abs(ratio) < 1e-6,
                                            jnp.abs(ratio - scale) < 1e-4)))
    ok_shared = bool(jnp.all(jnp.abs(ratio - ratio[0][None]) < 1e-4))
    ok_eval = bool(jnp.all(variational_dropout(x, 0, p=p, training=False) == x))

    # --- batch_first=True path (native kernel, no transposes) ---
    xb = jnp.transpose(x, (1, 0, 2))       # (B, T, H) example input
    outb = jax.block_until_ready(
        variational_dropout(xb, seed=7, p=p, batch_first=True, training=True))
    ratio_b = outb / jnp.where(xb == 0, 1.0, xb)
    ok_b_values = bool(jnp.all(jnp.logical_or(jnp.abs(ratio_b) < 1e-6,
                                              jnp.abs(ratio_b - scale) < 1e-4)))
    ok_b_shared = bool(jnp.all(jnp.abs(ratio_b - ratio_b[:, :1, :]) < 1e-4))

    assert out.shape == x.shape and out.dtype == x.dtype
    assert outb.shape == xb.shape and outb.dtype == xb.dtype
    assert ok_values and ok_shared and ok_eval and ok_b_values and ok_b_shared

    print("KERNEL_OK")
</pallas_src>

<mosaic_0001>
module attributes {stable_mosaic.version = 11 : i64} {
  func.func @_vd_mul_kernel(%arg0: i32, %arg1: memref<8x128xf32, #tpu.memory_space<vmem>>, %arg2: memref<1x128xf32, #tpu.memory_space<vmem>>, %arg3: memref<8x128xf32, #tpu.memory_space<vmem>>) attributes {dimension_semantics = [#tpu.dimension_semantics<parallel>], iteration_bounds = array<i64: 1>, scalar_prefetch = 0 : i64, scratch_operands = 0 : i64, tpu.core_type = #tpu.core_type<tc>, window_params = [{transform_indices = @transform_0, window_bounds = array<i64: 8, 128>}, {pipeline_mode = #tpu.pipeline_mode<synchronous>, transform_indices = @transform_1, window_bounds = array<i64: 1, 128>}, {transform_indices = @transform_2, window_bounds = array<i64: 8, 128>}]} {
    %c0 = arith.constant 0 : index
    %c0_0 = arith.constant 0 : index
    %0 = vector.load %arg1[%c0, %c0_0] : memref<8x128xf32, #tpu.memory_space<vmem>>, vector<8x128xf32>
    %c0_1 = arith.constant 0 : index
    %c0_2 = arith.constant 0 : index
    %1 = vector.load %arg2[%c0_1, %c0_2] : memref<1x128xf32, #tpu.memory_space<vmem>>, vector<1x128xf32>
    %2 = vector.broadcast %1 : vector<1x128xf32> to vector<8x128xf32>
    %3 = arith.mulf %0, %2 : vector<8x128xf32>
    %c0_3 = arith.constant 0 : index
    %c0_4 = arith.constant 0 : index
    %4 = vector.load %arg3[%c0_3, %c0_4] : memref<8x128xf32, #tpu.memory_space<vmem>>, vector<8x128xf32>
    tpu.vector_store %arg3[%c0_3, %c0_4], %3 {strides = array<i32>} : memref<8x128xf32, #tpu.memory_space<vmem>>, vector<8x128xf32>,
    return
  }
  func.func @transform_0(%arg0: i32) -> (i32, i32) {
    %c0_i32 = arith.constant 0 : i32
    %c0_i32_0 = arith.constant 0 : i32
    return %arg0, %c0_i32 : i32, i32
  }
  func.func @transform_1(%arg0: i32) -> (i32, i32) {
    %c0_i32 = arith.constant 0 : i32
    %c0_i32_0 = arith.constant 0 : i32
    %c0_i32_1 = arith.constant 0 : i32
    return %c0_i32, %c0_i32_0 : i32, i32
  }
  func.func @transform_2(%arg0: i32) -> (i32, i32) {
    %c0_i32 = arith.constant 0 : i32
    %c0_i32_0 = arith.constant 0 : i32
    return %arg0, %c0_i32 : i32, i32
  }
}

</mosaic_0001>

<llo_original>
// kernel: tpu_custom_call.1
$region0: #{tpu_custom_call.1}
  #allocation0 [shape = 'u32[]', space=smem, size = 0x4, offset = 0x4, fixed_abs, tag = 'smem constant byte address 0x4 - core index']
  #allocation1 [shape = 'u32[72,128]{1,0:T(1,128)}', space=vmem, size = 0x9000, scoped, tag = 'internal scratch']
  %s0 = inlined_call_operand.hbm [shape: f32[8,128], index: 0, kind: input, shape index: {}]
  %s1 = inlined_call_operand.hbm [shape: f32[1,128], index: 1, kind: input, shape index: {}]
  %s2 = inlined_call_operand.hbm [shape: f32[8,128], index: 2, kind: output, shape index: {}]
  %s3 = sld [smem:[#allocation0]]
  $region26: #{tpu_custom_call.1} parent=0
    _
  %s5 = ssub.s32 1, %s3
  %s6 = scalar_select 0, %s5, %s3
  $region1: #{tpu_custom_call.1} parent=0
    #allocation2 [shape = 'u8[4096]{0}', space=vmem, size = 0x1000, scoped, tag = 'input window, operand 0, single buffered']
    #allocation3 [shape = 's32[1]{0}', space=sflag, size = 0x4, scoped, tag = 'scoped memory for tpu_custom_call.1']
    #allocation4 [shape = 's32[1]{0}', space=sflag, size = 0x4, scoped, tag = 'scoped memory for tpu_custom_call.1']
    #allocation5 [shape = 'u8[512]{0}', space=vmem, size = 0x400, scoped, tag = 'input window, operand 1, single buffered']
    #allocation6 [shape = 's32[1]{0}', space=sflag, size = 0x4, scoped, tag = 'scoped memory for tpu_custom_call.1']
    #allocation7 [shape = 'u8[4096]{0}', space=vmem, size = 0x1000, scoped, tag = 'output window, operand 0, single buffered']
    %7 = vsyncpa [#allocation3], 0
    %8 = vsyncpa [#allocation6], 0
    %9 = vsyncpa [#allocation4], 0
    // Predicated region
    $region2: #{tpu_custom_call.1} parent=1 // pred_check
      _
    $region3: #{tpu_custom_call.1} parent=1 // pred_check_branch
      %11 = sbr.rel (0) target = $region5
    $region4: #{tpu_custom_call.1} parent=1 // pred_region
      %13 = vsyncadd [#allocation3], 0
      %s15 = sshll.u32 %s0, 4
      %s16 = int_to_ptr.hbm [resolvable:$true] %s15
      %s17 = sshll.u32 [#allocation2], 4
      %s18 = int_to_ptr.vmem [resolvable:$true] %s17
      %20 = dma.hbm_to_vmem [thread:$0]  %s16, 128, %s18, [#allocation3]
    $region5: #{tpu_custom_call.1} parent=1 // pred_fallthru
      _
    // Predicated region
    $region6: #{tpu_custom_call.1} parent=1 // pred_check
      _
    $region7: #{tpu_custom_call.1} parent=1 // pred_check_branch
      %22 = sbr.rel (0) target = $region9
    $region8: #{tpu_custom_call.1} parent=1 // pred_region
      %24 = vsyncadd [#allocation6], 0
      %s26 = sshll.u32 %s1, 4
      %s27 = int_to_ptr.hbm [resolvable:$true] %s26
      %s28 = sshll.u32 [#allocation5], 4
      %s29 = int_to_ptr.vmem [resolvable:$true] %s28
      %31 = dma.hbm_to_vmem [thread:$0]  %s27, 16, %s29, [#allocation6]
    $region9: #{tpu_custom_call.1} parent=1 // pred_fallthru
      _
    // Predicated region
    $region10: #{tpu_custom_call.1} parent=1 // pred_check
      _
    $region11: #{tpu_custom_call.1} parent=1 // pred_check_branch
      %33 = sbr.rel (0) target = $region13
    $region12: #{tpu_custom_call.1} parent=1 // pred_region
      %35 = dma.done [#allocation3], 128
    $region13: #{tpu_custom_call.1} parent=1 // pred_fallthru
      _
    // Predicated region
    $region14: #{tpu_custom_call.1} parent=1 // pred_check
      _
    $region15: #{tpu_custom_call.1} parent=1 // pred_check_branch
      %37 = sbr.rel (0) target = $region17
    $region16: #{tpu_custom_call.1} parent=1 // pred_region
      %39 = dma.done [#allocation6], 16
    $region17: #{tpu_custom_call.1} parent=1 // pred_fallthru
      _
    %v40 = vld [vmem:[#allocation2] sm:$0xff]
    %v41 = vld [vmem:[#allocation5] sm:$0x1]
    %v43 = vperm.slane %v41, 0
    %v45 = vmul.f32 %v40, %v43
    %46 = vst [vmem:[#allocation7] sm:$0xff] %v45
    // Predicated region
    $region18: #{tpu_custom_call.1} parent=1 // pred_check
      _
    $region19: #{tpu_custom_call.1} parent=1 // pred_check_branch
      %48 = sbr.rel (0) target = $region21
    $region20: #{tpu_custom_call.1} parent=1 // pred_region
      %50 = vsyncadd [#allocation4], 0
      %s52 = sshll.u32 [#allocation7], 4
      %s53 = int_to_ptr.vmem [resolvable:$true] %s52
      %s54 = sshll.u32 %s2, 4
      %s55 = int_to_ptr.hbm [resolvable:$true] %s54
      %57 = dma.vmem_to_hbm [thread:$0]  %s53, 128, %s55, [#allocation4]
    $region21: #{tpu_custom_call.1} parent=1 // pred_fallthru
      _
    // Predicated region
    $region22: #{tpu_custom_call.1} parent=1 // pred_check
      _
    $region23: #{tpu_custom_call.1} parent=1 // pred_check_branch
      %59 = sbr.rel (0) target = $region25
    $region24: #{tpu_custom_call.1} parent=1 // pred_region
      %61 = dma.done [#allocation4], 128
    $region25: #{tpu_custom_call.1} parent=1 // pred_fallthru
      _
    %62 = vsyncpa [#allocation3], 1
    %63 = vsyncpa [#allocation6], 1
    %64 = vsyncpa [#allocation4], 1

</llo_original>
